<compile_context>
chip_gen: v6e
topology: v6e:2x2x1
jax: 0.10.0
libtpu: 0.0.40
codegen_flags: <defaults>
</compile_context>

<pallas_src>
import functools

import jax
import jax.numpy as jnp
from jax.experimental import pallas as pl
from jax.experimental.pallas import tpu as pltpu


# ---------------------------------------------------------------------------
# Pallas kernel
# ---------------------------------------------------------------------------
def _rdb_conv_kernel(xh_ref, w_ref, b_ref, o_ref, *, W, TH):
    """Fused 3x3 conv + bias + ReLU + channel concat for one (batch, row-tile).

    xh_ref: (1, 1, 3, Cin, (TH+2)*W)  dx-shifted, row-halo'd padded input slab
    w_ref : (G, 9*Cin)                fused weights, K index = (dy*3+dx)*Cin + c
    b_ref : (G, 1)
    o_ref : (1, Cin + G, TH*W)        [x ; relu(conv(x))], channels on sublanes,
                                      flattened spatial on lanes (lane-dense)
    """
    THW = TH * W
    cols = []
    x_center = None
    for dy in range(3):
        for dx in range(3):
            # Static slice of the flattened (row, col) lane dim: rows [dy, dy+TH).
            piece = xh_ref[0, 0, dx, :, dy * W:dy * W + THW]   # (Cin, THW)
            cols.append(piece)
            if dy == 1 and dx == 1:
                x_center = piece                               # == unpadded x tile
    xcol = jnp.concatenate(cols, axis=0)                       # (9*Cin, THW)
    # Single fused matmul: K = 9*Cin, output is lane-dense (G, THW).
    acc = jnp.dot(w_ref[...], xcol, preferred_element_type=jnp.float32)
    conv = jnp.maximum(acc + b_ref[...], 0.0)                  # bias + ReLU (f32)
    o_ref[0] = jnp.concatenate([x_center, conv], axis=0).astype(o_ref.dtype)


# ---------------------------------------------------------------------------
# Wrapper: layout glue + pallas_call plumbing
# ---------------------------------------------------------------------------
def _pick_row_tile(H, W):
    """Row-tile TH with H % TH == 0 and TH*W a multiple of 128 (<= 2048 lanes)."""
    cands = [th for th in range(1, H + 1)
             if H % th == 0 and (th * W) % 128 == 0 and th * W <= 2048]
    if not cands:
        return H   # whole image; block last dim equals the full HW (still legal)
    proper = [th for th in cands if th < H]   # prefer >=2 tiles -> 2 parallel axes
    return max(proper) if proper else H


def rdb_conv_forward(x_nchw, w_fused, b):
    """RDB_Conv forward: y = concat([x, relu(conv3x3(x))], dim=1).

    x_nchw : (N, Cin, H, W) float32
    w_fused: (G, 9*Cin) with w_fused[g, (dy*3+dx)*Cin + c] == torch weight[g, c, dy, dx]
    b      : (G,)
    returns: (N, Cin + G, H, W)
    """
    N, Cin, H, W = x_nchw.shape
    G = w_fused.shape[0]
    TH = _pick_row_tile(H, W)
    n_tiles = H // TH
    THW = TH * W

    # Layout glue (plain JAX): pad, 3 horizontal shifts, per-row-tile halo slabs.
    xpad = jnp.pad(x_nchw, ((0, 0), (0, 0), (1, 1), (1, 1)))            # (N,Cin,H+2,W+2)
    xsh = jnp.stack([xpad[:, :, :, dx:dx + W] for dx in range(3)], 1)   # (N,3,Cin,H+2,W)
    slabs = [xsh[:, :, :, t * TH:t * TH + TH + 2, :] for t in range(n_tiles)]
    xh = jnp.stack(slabs, axis=1)                                       # (N,T,3,Cin,TH+2,W)
    xh = xh.reshape(N, n_tiles, 3, Cin, (TH + 2) * W)

    b2 = b.reshape(G, 1)
    kernel = functools.partial(_rdb_conv_kernel, W=W, TH=TH)

    flops = 2 * N * H * W * (9 * Cin) * G
    bytes_accessed = 4 * (xh.size + w_fused.size + b2.size + N * (Cin + G) * H * W)

    out = pl.pallas_call(
        kernel,
        out_shape=jax.ShapeDtypeStruct((N, Cin + G, H * W), x_nchw.dtype),
        grid_spec=pltpu.PrefetchScalarGridSpec(
            num_scalar_prefetch=0,
            grid=(N, n_tiles),
            in_specs=[
                pl.BlockSpec((1, 1, 3, Cin, (TH + 2) * W),
                             lambda n, t: (n, t, 0, 0, 0)),
                pl.BlockSpec((G, 9 * Cin), lambda n, t: (0, 0)),   # constant -> no re-DMA
                pl.BlockSpec((G, 1), lambda n, t: (0, 0)),         # constant -> no re-DMA
            ],
            out_specs=pl.BlockSpec((1, Cin + G, THW), lambda n, t: (n, 0, t)),
        ),
        compiler_params=pltpu.CompilerParams(
            dimension_semantics=("parallel", "parallel")),
        cost_estimate=pl.CostEstimate(
            flops=flops, transcendentals=0, bytes_accessed=bytes_accessed),
    )(xh, w_fused, b2)

    return out.reshape(N, Cin + G, H, W)


# ---------------------------------------------------------------------------
# Pure-JAX reference (same math) for validation
# ---------------------------------------------------------------------------
def rdb_conv_reference(x_nchw, w_fused, b):
    N, Cin, H, W = x_nchw.shape
    G = w_fused.shape[0]
    wk = w_fused.reshape(G, 3, 3, Cin).transpose(0, 3, 1, 2)   # -> OIHW
    out = jax.lax.conv_general_dilated(
        x_nchw, wk, (1, 1), "SAME",
        dimension_numbers=("NCHW", "OIHW", "NCHW"),
    ) + b.reshape(1, G, 1, 1)
    return jnp.concatenate([x_nchw, jnp.maximum(out, 0.0)], axis=1)


if __name__ == "__main__":
    # RDB_Conv(inChannels=8, growRate=8, kSize=3); input NCHW (2, 8, 16, 16).
    N, Cin, G, H, W = 2, 8, 8, 16, 16

    key = jax.random.PRNGKey(0)
    kx, kw, kb = jax.random.split(key, 3)
    x = jax.random.normal(kx, (N, Cin, H, W), jnp.float32)
    bound = 1.0 / float(Cin * 9) ** 0.5        # nn.Conv2d default init bound
    w = jax.random.uniform(kw, (G, 9 * Cin), jnp.float32, -bound, bound)
    b = jax.random.uniform(kb, (G,), jnp.float32, -bound, bound)

    y = jax.block_until_ready(rdb_conv_forward(x, w, b))
    y_ref = jax.block_until_ready(rdb_conv_reference(x, w, b))

    assert y.shape == (N, Cin + G, H, W)
    assert jnp.allclose(y, y_ref, atol=1e-3, rtol=1e-3)
    print("KERNEL_OK")
</pallas_src>

<mosaic_0001>
module attributes {stable_mosaic.version = 11 : i64} {
  func.func @_rdb_conv_kernel(%arg0: i32, %arg1: i32, %arg2: memref<1x1x3x8x160xf32, #tpu.memory_space<vmem>>, %arg3: memref<8x72xf32, #tpu.memory_space<vmem>>, %arg4: memref<8x1xf32, #tpu.memory_space<vmem>>, %arg5: memref<1x16x128xf32, #tpu.memory_space<vmem>>) attributes {dimension_semantics = [#tpu.dimension_semantics<parallel>, #tpu.dimension_semantics<parallel>], iteration_bounds = array<i64: 2, 2>, scalar_prefetch = 0 : i64, scratch_operands = 0 : i64, tpu.core_type = #tpu.core_type<tc>, window_params = [{transform_indices = @transform_0, window_bounds = array<i64: 1, 1, 3, 8, 160>}, {pipeline_mode = #tpu.pipeline_mode<synchronous>, transform_indices = @transform_1, window_bounds = array<i64: 8, 72>}, {pipeline_mode = #tpu.pipeline_mode<synchronous>, transform_indices = @transform_2, window_bounds = array<i64: 8, 1>}, {transform_indices = @transform_3, window_bounds = array<i64: 1, 16, 128>}]} {
    %c0 = arith.constant 0 : index
    %c0_0 = arith.constant 0 : index
    %c0_1 = arith.constant 0 : index
    %c0_2 = arith.constant 0 : index
    %c0_3 = arith.constant 0 : index
    %0 = vector.load %arg2[%c0, %c0_0, %c0_1, %c0_2, %c0_3] : memref<1x1x3x8x160xf32, #tpu.memory_space<vmem>>, vector<1x1x1x8x128xf32>
    %1 = vector.shape_cast %0 : vector<1x1x1x8x128xf32> to vector<8x128xf32>
    %c0_4 = arith.constant 0 : index
    %c0_5 = arith.constant 0 : index
    %c1 = arith.constant 1 : index
    %c0_6 = arith.constant 0 : index
    %c0_7 = arith.constant 0 : index
    %2 = vector.load %arg2[%c0_4, %c0_5, %c1, %c0_6, %c0_7] : memref<1x1x3x8x160xf32, #tpu.memory_space<vmem>>, vector<1x1x1x8x128xf32>
    %3 = vector.shape_cast %2 : vector<1x1x1x8x128xf32> to vector<8x128xf32>
    %c0_8 = arith.constant 0 : index
    %c0_9 = arith.constant 0 : index
    %c2 = arith.constant 2 : index
    %c0_10 = arith.constant 0 : index
    %c0_11 = arith.constant 0 : index
    %4 = vector.load %arg2[%c0_8, %c0_9, %c2, %c0_10, %c0_11] : memref<1x1x3x8x160xf32, #tpu.memory_space<vmem>>, vector<1x1x1x8x128xf32>
    %5 = vector.shape_cast %4 : vector<1x1x1x8x128xf32> to vector<8x128xf32>
    %c0_12 = arith.constant 0 : index
    %c0_13 = arith.constant 0 : index
    %c0_14 = arith.constant 0 : index
    %c0_15 = arith.constant 0 : index
    %c16 = arith.constant 16 : index
    %6 = vector.load %arg2[%c0_12, %c0_13, %c0_14, %c0_15, %c16] : memref<1x1x3x8x160xf32, #tpu.memory_space<vmem>>, vector<1x1x1x8x128xf32>
    %7 = vector.shape_cast %6 : vector<1x1x1x8x128xf32> to vector<8x128xf32>
    %c0_16 = arith.constant 0 : index
    %c0_17 = arith.constant 0 : index
    %c1_18 = arith.constant 1 : index
    %c0_19 = arith.constant 0 : index
    %c16_20 = arith.constant 16 : index
    %8 = vector.load %arg2[%c0_16, %c0_17, %c1_18, %c0_19, %c16_20] : memref<1x1x3x8x160xf32, #tpu.memory_space<vmem>>, vector<1x1x1x8x128xf32>
    %9 = vector.shape_cast %8 : vector<1x1x1x8x128xf32> to vector<8x128xf32>
    %c0_21 = arith.constant 0 : index
    %c0_22 = arith.constant 0 : index
    %c2_23 = arith.constant 2 : index
    %c0_24 = arith.constant 0 : index
    %c16_25 = arith.constant 16 : index
    %10 = vector.load %arg2[%c0_21, %c0_22, %c2_23, %c0_24, %c16_25] : memref<1x1x3x8x160xf32, #tpu.memory_space<vmem>>, vector<1x1x1x8x128xf32>
    %11 = vector.shape_cast %10 : vector<1x1x1x8x128xf32> to vector<8x128xf32>
    %c0_26 = arith.constant 0 : index
    %c0_27 = arith.constant 0 : index
    %c0_28 = arith.constant 0 : index
    %c0_29 = arith.constant 0 : index
    %c32 = arith.constant 32 : index
    %12 = vector.load %arg2[%c0_26, %c0_27, %c0_28, %c0_29, %c32] : memref<1x1x3x8x160xf32, #tpu.memory_space<vmem>>, vector<1x1x1x8x128xf32>
    %13 = vector.shape_cast %12 : vector<1x1x1x8x128xf32> to vector<8x128xf32>
    %c0_30 = arith.constant 0 : index
    %c0_31 = arith.constant 0 : index
    %c1_32 = arith.constant 1 : index
    %c0_33 = arith.constant 0 : index
    %c32_34 = arith.constant 32 : index
    %14 = vector.load %arg2[%c0_30, %c0_31, %c1_32, %c0_33, %c32_34] : memref<1x1x3x8x160xf32, #tpu.memory_space<vmem>>, vector<1x1x1x8x128xf32>
    %15 = vector.shape_cast %14 : vector<1x1x1x8x128xf32> to vector<8x128xf32>
    %c0_35 = arith.constant 0 : index
    %c0_36 = arith.constant 0 : index
    %c2_37 = arith.constant 2 : index
    %c0_38 = arith.constant 0 : index
    %c32_39 = arith.constant 32 : index
    %16 = vector.load %arg2[%c0_35, %c0_36, %c2_37, %c0_38, %c32_39] : memref<1x1x3x8x160xf32, #tpu.memory_space<vmem>>, vector<1x1x1x8x128xf32>
    %17 = vector.shape_cast %16 : vector<1x1x1x8x128xf32> to vector<8x128xf32>
    %18 = tpu.concatenate %1, %3, %5, %7, %9, %11, %13, %15, %17 in 0 : vector<8x128xf32>, vector<8x128xf32>, vector<8x128xf32>, vector<8x128xf32>, vector<8x128xf32>, vector<8x128xf32>, vector<8x128xf32>, vector<8x128xf32>, vector<8x128xf32> -> vector<72x128xf32>
    %c0_40 = arith.constant 0 : index
    %c0_41 = arith.constant 0 : index
    %19 = vector.load %arg3[%c0_40, %c0_41] : memref<8x72xf32, #tpu.memory_space<vmem>>, vector<8x72xf32>
    %cst = arith.constant dense<0.000000e+00> : vector<8x128xf32>
    %20 = tpu.matmul %19, %18, %cst {dimension_numbers = #tpu.dot_dimension_numbers<[1], [0], [0], [1], [0, 0, 1, 1], [], []>} : vector<8x72xf32>, vector<72x128xf32>, vector<8x128xf32> -> vector<8x128xf32>
    %c0_42 = arith.constant 0 : index
    %c0_43 = arith.constant 0 : index
    %21 = vector.load %arg4[%c0_42, %c0_43] : memref<8x1xf32, #tpu.memory_space<vmem>>, vector<8x1xf32>
    %22 = vector.broadcast %21 : vector<8x1xf32> to vector<8x128xf32>
    %23 = arith.addf %20, %22 : vector<8x128xf32>
    %cst_44 = arith.constant 0.000000e+00 : f32
    %24 = vector.broadcast %cst_44 : f32 to vector<8x128xf32>
    %25 = arith.maximumf %23, %24 : vector<8x128xf32>
    %26 = tpu.concatenate %9, %25 in 0 : vector<8x128xf32>, vector<8x128xf32> -> vector<16x128xf32>
    %c0_45 = arith.constant 0 : index
    %c0_46 = arith.constant 0 : index
    %c0_47 = arith.constant 0 : index
    %27 = vector.load %arg5[%c0_45, %c0_46, %c0_47] : memref<1x16x128xf32, #tpu.memory_space<vmem>>, vector<1x16x128xf32>
    %28 = vector.shape_cast %27 : vector<1x16x128xf32> to vector<16x128xf32>
    %29 = vector.shape_cast %26 : vector<16x128xf32> to vector<1x16x128xf32>
    tpu.vector_store %arg5[%c0_45, %c0_46, %c0_47], %29 {strides = array<i32>} : memref<1x16x128xf32, #tpu.memory_space<vmem>>, vector<1x16x128xf32>,
    return
  }
  func.func @transform_0(%arg0: i32, %arg1: i32) -> (i32, i32, i32, i32, i32) {
    %c0_i32 = arith.constant 0 : i32
    %c0_i32_0 = arith.constant 0 : i32
    %c0_i32_1 = arith.constant 0 : i32
    %c0_i32_2 = arith.constant 0 : i32
    return %arg0, %arg1, %c0_i32, %c0_i32_0, %c0_i32_1 : i32, i32, i32, i32, i32
  }
  func.func @transform_1(%arg0: i32, %arg1: i32) -> (i32, i32) {
    %c0_i32 = arith.constant 0 : i32
    %c0_i32_0 = arith.constant 0 : i32
    %c0_i32_1 = arith.constant 0 : i32
    return %c0_i32, %c0_i32_0 : i32, i32
  }
  func.func @transform_2(%arg0: i32, %arg1: i32) -> (i32, i32) {
    %c0_i32 = arith.constant 0 : i32
    %c0_i32_0 = arith.constant 0 : i32
    %c0_i32_1 = arith.constant 0 : i32
    return %c0_i32, %c0_i32_0 : i32, i32
  }
  func.func @transform_3(%arg0: i32, %arg1: i32) -> (i32, i32, i32) {
    %c0_i32 = arith.constant 0 : i32
    %c0_i32_0 = arith.constant 0 : i32
    return %arg0, %c0_i32, %arg1 : i32, i32, i32
  }
}

</mosaic_0001>

<llo_original>
// kernel: tpu_custom_call.1
$region0: #{tpu_custom_call.1}
  #allocation0 [shape = 'u32[]', space=smem, size = 0x4, offset = 0x4, fixed_abs, tag = 'smem constant byte address 0x4 - core index']
  #allocation1 [shape = 'u32[144,128]{1,0:T(1,128)}', space=vmem, size = 0x12000, scoped, tag = 'internal scratch']
  %s0 = inlined_call_operand.hbm [shape: f32[2,2,3,8,160], index: 0, kind: input, shape index: {}]
  %s1 = inlined_call_operand.vmem [shape: f32[8,72], index: 1, kind: input, shape index: {}]
  %s2 = inlined_call_operand.vmem [shape: f32[8,1], index: 2, kind: input, shape index: {}]
  %s3 = inlined_call_operand.hbm [shape: f32[2,16,256], index: 3, kind: output, shape index: {}]
  %s4 = sld [smem:[#allocation0]]
  $region49: #{tpu_custom_call.1} parent=0
    _
  %s6 = ssub.s32 1, %s4
  %s7 = scalar_select 0, %s6, %s4
  $region1: #{tpu_custom_call.1} parent=0
    #allocation2 [shape = 'u8[49152]{0}', space=vmem, size = 0xc000, scoped, tag = 'input window, operand 0']
    #allocation3 [shape = 's32[2]{0}', space=sflag, size = 0x8, scoped, tag = 'scoped memory for tpu_custom_call.1']
    #allocation4 [shape = 's32[2]{0}', space=sflag, size = 0x8, scoped, tag = 'scoped memory for tpu_custom_call.1']
    #allocation5 [shape = 'u8[16384]{0}', space=vmem, size = 0x4000, scoped, tag = 'output window, operand 0']
    %8 = vsyncpa [#allocation3], 0
    %s9 = scalar_lea.sflag [#allocation3], 1
    %10 = vsyncpa %s9, 0
    %11 = vsyncpa [#allocation4], 0
    %s12 = scalar_lea.sflag [#allocation4], 1
    %13 = vsyncpa %s12, 0
    loop: start=0, step=1, limit=6
    $region2: #{tpu_custom_call.1} parent=1 // loop_pre_header
      _
    $region3: #{tpu_custom_call.1} parent=1 // loop_header
      %s15 = sphi 0, %s19
      %p16 = scmp.ge.s32.totalorder %s15, 6
      %s22 = sphi 0, %s34
      %s23 = sphi 0, %s30
      %s24 = sphi 0, %s22
      %s25 = sphi 0, %s23
      %s26 = sphi 0, %s24
      %s27 = sphi 0, %s25
      %s39 = sphi 0, %s41
      %s42 = sphi 0, %s39
      %s43 = sphi 0, %s42
      %s59 = sphi 0, %s43
      %s63 = sphi 0, %s63
      %s65 = sphi 0, %s63
      %s66 = sphi 0, %s65
      %s80 = sphi 0, %s66
      %s84 = sphi 0, %s84
      %s86 = sphi 0, %s84
      %s87 = sphi 0, %s86
      %s101 = sphi 0, %s87
      %s109 = sphi 0, %s111
      %s112 = sphi 0, %s109
      %s113 = sphi 0, %s112
      %s129 = sphi 0, %s113
    $region4: #{tpu_custom_call.1} parent=1 // loop_header_branch
      %18 = sbr.rel (%p16) target = $region8
    $region5: #{tpu_custom_call.1} parent=1 // loop_body
      %s20 = ssub.s32 %s15, 1
      %s21 = ssub.s32 %s15, 2
      %s28 = sadd.s32 1, %s23
      %p29 = scmp.ge.s32.totalorder %s28, 2
      %s30 = scalar_select %p29, 0, %s28
      %s31 = sadd.s32 1, %s22
      %s32 = scalar_select %p29, %s31, %s22
      %p33 = scmp.ge.s32.totalorder %s32, 2
      %s34 = scalar_select %p33, 0, %s32
      %s35 = ssub.s32 %s22, %s34
      %s36 = ssub.s32 %s23, %s30
      %s37 = sor.u32 %s35, %s36
      %p38 = scmp.eq.s32.totalorder %s37, 0
      %s40 = sadd.s32 %s39, 1
      %s41 = scalar_select %p38, %s39, %s40
      %p44 = pneg %p38
      %p45 = scmp.eq.s32.totalorder %s15, 3
      %p46 = por %p44, %p45
      %p47 = scmp.ne.s32.totalorder %s39, %s42
      %p48 = scmp.eq.s32.totalorder %s15, 0
      %p49 = por %p47, %p48
      %p50 = scmp.ne.s32.totalorder %s39, %s42
      %p51 = scmp.eq.s32.totalorder %s20, 3
      %p52 = por %p50, %p51
      %p53 = scmp.ne.s32.totalorder %s42, %s43
      %p54 = scmp.eq.s32.totalorder %s20, 0
      %p55 = por %p53, %p54
      %p56 = scmp.ne.s32.totalorder %s42, %s43
      %p57 = scmp.eq.s32.totalorder %s21, 3
      %p58 = por %p56, %p57
      %p60 = scmp.ne.s32.totalorder %s43, %s59
      %p61 = scmp.eq.s32.totalorder %s21, 0
      %p62 = por %p60, %p61
      %s64 = sadd.s32 %s63, 1
      %p67 = scmp.eq.s32.totalorder %s15, 3
      %p68 = scmp.ne.s32.totalorder %s63, %s65
      %p69 = scmp.eq.s32.totalorder %s15, 0
      %p70 = por %p68, %p69
      %p71 = scmp.ne.s32.totalorder %s63, %s65
      %p72 = scmp.eq.s32.totalorder %s20, 3
      %p73 = por %p71, %p72
      %p74 = scmp.ne.s32.totalorder %s65, %s66
      %p75 = scmp.eq.s32.totalorder %s20, 0
      %p76 = por %p74, %p75
      %p77 = scmp.ne.s32.totalorder %s65, %s66
      %p78 = scmp.eq.s32.totalorder %s21, 3
      %p79 = por %p77, %p78
      %p81 = scmp.ne.s32.totalorder %s66, %s80
      %p82 = scmp.eq.s32.totalorder %s21, 0
      %p83 = por %p81, %p82
      %s85 = sadd.s32 %s84, 1
      %p88 = scmp.eq.s32.totalorder %s15, 3
      %p89 = scmp.ne.s32.totalorder %s84, %s86
      %p90 = scmp.eq.s32.totalorder %s15, 0
      %p91 = por %p89, %p90
      %p92 = scmp.ne.s32.totalorder %s84, %s86
      %p93 = scmp.eq.s32.totalorder %s20, 3
      %p94 = por %p92, %p93
      %p95 = scmp.ne.s32.totalorder %s86, %s87
      %p96 = scmp.eq.s32.totalorder %s20, 0
      %p97 = por %p95, %p96
      %p98 = scmp.ne.s32.totalorder %s86, %s87
      %p99 = scmp.eq.s32.totalorder %s21, 3
      %p100 = por %p98, %p99
      %p102 = scmp.ne.s32.totalorder %s87, %s101
      %p103 = scmp.eq.s32.totalorder %s21, 0
      %p104 = por %p102, %p103
      %s105 = ssub.s32 %s22, %s34
      %s106 = ssub.s32 %s23, %s30
      %s107 = sor.u32 %s105, %s106
      %p108 = scmp.eq.s32.totalorder %s107, 0
      %s110 = sadd.s32 %s109, 1
      %s111 = scalar_select %p108, %s109, %s110
      %p114 = pneg %p108
      %p115 = scmp.eq.s32.totalorder %s15, 3
      %p116 = por %p114, %p115
      %p117 = scmp.ne.s32.totalorder %s109, %s112
      %p118 = scmp.eq.s32.totalorder %s15, 0
      %p119 = por %p117, %p118
      %p120 = scmp.ne.s32.totalorder %s109, %s112
      %p121 = scmp.eq.s32.totalorder %s20, 3
      %p122 = por %p120, %p121
      %p123 = scmp.ne.s32.totalorder %s112, %s113
      %p124 = scmp.eq.s32.totalorder %s20, 0
      %p125 = por %p123, %p124
      %p126 = scmp.ne.s32.totalorder %s112, %s113
      %p127 = scmp.eq.s32.totalorder %s21, 3
      %p128 = por %p126, %p127
      %p130 = scmp.ne.s32.totalorder %s113, %s129
      %p131 = scmp.eq.s32.totalorder %s21, 0
      %p132 = por %p130, %p131
      %p133 = scmp.le.s32.totalorder 1, %s15
      %p134 = scmp.lt.s32.totalorder %s15, 5
      %p135 = pnand %p133, %p134
      %p136 = pneg %p135
      // Predicated region
      $region9: #{tpu_custom_call.1} parent=5 // pred_check
        _
      $region10: #{tpu_custom_call.1} parent=5 // pred_check_branch
        %138 = sbr.rel (%p135) target = $region12
      $region11: #{tpu_custom_call.1} parent=5 // pred_region
        %s139 = ssub.s32 %s15, 1
        // Predicated region
        $region13: #{tpu_custom_call.1} parent=11 // pred_check
          %p140 = pneg %p76
        $region14: #{tpu_custom_call.1} parent=11 // pred_check_branch
          %142 = sbr.rel (%p140) target = $region16
        $region15: #{tpu_custom_call.1} parent=11 // pred_region
          _
        $region16: #{tpu_custom_call.1} parent=11 // pred_fallthru
          _
        // Predicated region
        $region17: #{tpu_custom_call.1} parent=11 // pred_check
          %p143 = pneg %p97
        $region18: #{tpu_custom_call.1} parent=11 // pred_check_branch
          %145 = sbr.rel (%p143) target = $region20
        $region19: #{tpu_custom_call.1} parent=11 // pred_region
          _
        $region20: #{tpu_custom_call.1} parent=11 // pred_fallthru
          _
      $region12: #{tpu_custom_call.1} parent=5 // pred_fallthru
        _
      %p146 = scmp.lt.s32.totalorder %s15, 4
      // Predicated region
      $region21: #{tpu_custom_call.1} parent=5 // pred_check
        %p147 = pneg %p146
      $region22: #{tpu_custom_call.1} parent=5 // pred_check_branch
        %149 = sbr.rel (%p147) target = $region24
      $region23: #{tpu_custom_call.1} parent=5 // pred_region
        // Predicated region
        $region25: #{tpu_custom_call.1} parent=23 // pred_check
          %p150 = pneg %p49
        $region26: #{tpu_custom_call.1} parent=23 // pred_check_branch
          %152 = sbr.rel (%p150) target = $region28
        $region27: #{tpu_custom_call.1} parent=23 // pred_region
          %s153 = sand.u32 %s39, 1
          %s154 = scalar_lea.sflag [#allocation3], %s153
          %s155 = sand.u32 %s39, 1
          %s156 = smul.addr %s155, 48
          %s157 = scalar_lea.vmem [#allocation2], %s156
          %s159 = ssub.s32 768, 768
          %160 = vsyncadd %s154, %s159
          %s161 = smul.addr %s23, 6
          %s162 = smul.addr %s22, 12
          %s163 = sadd.s32 %s161, %s162
          %s164 = smul.addr %s163, 128
          %s165 = scalar_lea.hbm %s0, %s164
          %s166 = sshll.u32 %s157, 4
          %s167 = int_to_ptr.vmem [resolvable:$true] %s166
          %172 = dma.hbm_to_vmem [thread:$0]  %s165, 768, %s167, %s154, 256, 256, 16
        $region28: #{tpu_custom_call.1} parent=23 // pred_fallthru
          _
      $region24: #{tpu_custom_call.1} parent=5 // pred_fallthru
        _
      %p173 = scmp.le.s32.totalorder 1, %s15
      %p174 = scmp.lt.s32.totalorder %s15, 5
      %p175 = pnand %p173, %p174
      %p176 = pneg %p175
      // Predicated region
      $region29: #{tpu_custom_call.1} parent=5 // pred_check
        _
      $region30: #{tpu_custom_call.1} parent=5 // pred_check_branch
        %178 = sbr.rel (%p175) target = $region32
      $region31: #{tpu_custom_call.1} parent=5 // pred_region
        %s179 = ssub.s32 %s15, 1
        %s180 = sand.u32 %s42, 1
        %s181 = scalar_lea.sflag [#allocation3], %s180
        %s182 = sand.u32 %s42, 1
        %s183 = smul.addr %s182, 48
        %s184 = scalar_lea.vmem [#allocation2], %s183
        // Predicated region
        $region33: #{tpu_custom_call.1} parent=31 // pred_check
          %p185 = pneg %p55
        $region34: #{tpu_custom_call.1} parent=31 // pred_check_branch
          %187 = sbr.rel (%p185) target = $region36
        $region35: #{tpu_custom_call.1} parent=31 // pred_region
          %188 = dma.done %s181, 768
        $region36: #{tpu_custom_call.1} parent=31 // pred_fallthru
          _
        %s189 = sand.u32 %s42, 1
        %s190 = scalar_lea.sflag [#allocation3], %s189
        %s191 = sand.u32 %s42, 1
        %s192 = smul.addr %s191, 48
        %s193 = scalar_lea.vmem [#allocation2], %s192
        %p194 = pneg %p55
        %p195 = pneg %p52
        %p196 = pneg %p76
        %p197 = pneg %p73
        %p198 = pneg %p97
        %p199 = pneg %p94
        %p200 = pneg %p125
        %p201 = pneg %p122
        %s202 = sand.u32 %s112, 1
        %s203 = scalar_lea.sflag [#allocation4], %s202
        %s204 = sand.u32 %s112, 1
        %s205 = smul.addr %s204, 16
        %s206 = scalar_lea.vmem [#allocation5], %s205
        %v207 = vld [vmem:[%s184] sm:$0xff]
        %s208 = scalar_lea.vmem %s184, 16 [#allocation2]
        %v209 = vld [vmem:[%s208] sm:$0xff]
        %s210 = scalar_lea.vmem %s184, 32 [#allocation2]
        %v211 = vld [vmem:[%s210] sm:$0xff]
        %v212 = vld [vmem:[%s184 + $0x8] sm:$0xff]
        %v213 = vld [vmem:[%s208 + $0x8] sm:$0xff]
        %v214 = vld [vmem:[%s210 + $0x8] sm:$0xff]
        %217 = vrot.lane.b32.xlu0 %v207, 112
        %v218 = vpop.permute.xlu0 %217
        %219 = vrot.lane.b32.xlu0 %v212, 112
        %v220 = vpop.permute.xlu0 %219
        %vm221 = vcmask 916480
        %v222 = vsel %vm221, %v218, %v220
        %226 = vrot.lane.b32.xlu0 %v209, 112
        %v227 = vpop.permute.xlu0 %226
        %228 = vrot.lane.b32.xlu0 %v213, 112
        %v229 = vpop.permute.xlu0 %228
        %v230 = vsel %vm221, %v227, %v229
        %234 = vrot.lane.b32.xlu0 %v211, 112
        %v235 = vpop.permute.xlu0 %234
        %236 = vrot.lane.b32.xlu0 %v214, 112
        %v237 = vpop.permute.xlu0 %236
        %v238 = vsel %vm221, %v235, %v237
        %240 = vrot.lane.b32.xlu0 %v207, 96
        %v241 = vpop.permute.xlu0 %240
        %242 = vrot.lane.b32.xlu0 %v212, 96
        %v243 = vpop.permute.xlu0 %242
        %vm244 = vcmask 785408
        %v245 = vsel %vm244, %v241, %v243
        %247 = vrot.lane.b32.xlu0 %v209, 96
        %v248 = vpop.permute.xlu0 %247
        %249 = vrot.lane.b32.xlu0 %v213, 96
        %v250 = vpop.permute.xlu0 %249
        %v251 = vsel %vm244, %v248, %v250
        %253 = vrot.lane.b32.xlu0 %v211, 96
        %v254 = vpop.permute.xlu0 %253
        %255 = vrot.lane.b32.xlu0 %v214, 96
        %v256 = vpop.permute.xlu0 %255
        %v257 = vsel %vm244, %v254, %v256
        %v259 = vld [vmem:[%s1] sm:$0xff]
        %v260 = vld [vmem:[%s2] sm:$0xff]
        %262 = vset.pattern.permute.xlu0 0
        %263 = vperm.xlu0 %262, %v260
        %v264 = vpop.permute.xlu0 %263
        %vm266 = vcmask 588800
        %v268 = vsel %vm266, %v259, 0
        %270 = vmatprep.subr.mxu0 0.0
        %271 = vmatpush1.msra.mxu0 0.0
        %272 = vmatprep.subr.mxu0 0.0
        %273 = vmatpush1.msra.mxu0 0.0
        %274 = vmatprep.subr.mxu0 0.0
        %275 = vmatpush1.msra.mxu0 0.0
        %276 = vmatprep.subr.mxu0 0.0
        %277 = vmatpush1.msra.mxu0 0.0
        %278 = vmatprep.subr.mxu0 0.0
        %279 = vmatpush1.msra.mxu0 0.0
        %280 = vmatprep.subr.mxu0 0.0
        %281 = vmatpush1.msra.mxu0 0.0
        %282 = vmatprep.subr.mxu0 0.0
        %283 = vmatpush1.msra.mxu0 0.0
        %284 = vmatprep.subr.mxu0 0.0
        %285 = vmatpush1.msra.mxu0 %v257
        %286 = vmatprep.subr.mxu0 0.0
        %287 = vmatpush1.msra.mxu0 %v251
        %288 = vmatprep.subr.mxu0 0.0
        %289 = vmatpush1.msra.mxu0 %v245
        %290 = vmatprep.subr.mxu0 0.0
        %291 = vmatpush1.msra.mxu0 %v238
        %292 = vmatprep.subr.mxu0 0.0
        %293 = vmatpush1.msra.mxu0 %v230
        %294 = vmatprep.subr.mxu0 0.0
        %295 = vmatpush1.msra.mxu0 %v222
        %296 = vmatprep.subr.mxu0 0.0
        %297 = vmatpush1.msra.mxu0 %v211
        %298 = vmatprep.subr.mxu0 0.0
        %299 = vmatpush1.msra.mxu0 %v209
        %300 = vmatprep.subr.mxu0 0.0
        %301 = vmatpush1.msra.mxu0 %v207
        %302 = vmatprep.subr.mxu0 0.0
        %303 = vmatpush2.msra.mxu0 0.0
        %304 = vmatprep.subr.mxu0 0.0
        %305 = vmatpush2.msra.mxu0 0.0
        %306 = vmatprep.subr.mxu0 0.0
        %307 = vmatpush2.msra.mxu0 0.0
        %308 = vmatprep.subr.mxu0 0.0
        %309 = vmatpush2.msra.mxu0 0.0
        %310 = vmatprep.subr.mxu0 0.0
        %311 = vmatpush2.msra.mxu0 0.0
        %312 = vmatprep.subr.mxu0 0.0
        %313 = vmatpush2.msra.mxu0 0.0
        %314 = vmatprep.subr.mxu0 0.0
        %315 = vmatpush2.msra.mxu0 0.0
        %316 = vmatprep.subr.mxu0 0.0
        %317 = vmatpush2.msra.mxu0 0.0
        %318 = vmatprep.subr.mxu0 0.0
        %319 = vmatpush2.msra.mxu0 0.0
        %320 = vmatprep.subr.mxu0 0.0
        %321 = vmatpush2.msra.mxu0 0.0
        %322 = vmatprep.subr.mxu0 0.0
        %323 = vmatpush2.msra.mxu0 0.0
        %324 = vmatprep.subr.mxu0 0.0
        %325 = vmatpush2.msra.mxu0 0.0
        %326 = vmatprep.subr.mxu0 0.0
        %327 = vmatpush2.msra.mxu0 0.0
        %328 = vmatprep.subr.mxu0 0.0
        %329 = vmatpush2.msra.mxu0 0.0
        %330 = vmatprep.subr.mxu0 0.0
        %331 = vmatpush2.msra.mxu0 0.0
        %332 = vmatprep.subr.mxu0 0.0
        %333 = vmatpush2.msra.mxu0 0.0
        %334 = vmatprep.mubr.f32.mxu0 0.0
        %335 = vmatmul.mubr.f32.gmra.mxu0 %v268
        %v336 = vpop.f32.mrf.mxu0
        %v337 = vadd.f32 %v264, %v336
        %v338 = vpop.f32.mrf.mxu0
        %339 = vdwg.mxu0
        %v340 = vmax.f32 %v337, 0.0
        %342 = vrot.lane.b32.xlu0 %v340, 16
        %v343 = vpop.permute.xlu0 %342
        %344 = vrot.lane.b32.xlu0 %v343, 112
        %v345 = vpop.permute.xlu0 %344
        %347 = vst [vmem:[%s206] sm:$0xff] %v230
        %348 = vst [vmem:[%s206 + $0x8] sm:$0xff] %v345
        %s349 = sand.u32 %s112, 1
        %s350 = scalar_lea.sflag [#allocation4], %s349
        %s351 = sand.u32 %s112, 1
        %s352 = smul.addr %s351, 16
        %s353 = scalar_lea.vmem [#allocation5], %s352
        // Predicated region
        $region37: #{tpu_custom_call.1} parent=31 // pred_check
          %p354 = pneg %p122
        $region38: #{tpu_custom_call.1} parent=31 // pred_check_branch
          %356 = sbr.rel (%p354) target = $region40
        $region39: #{tpu_custom_call.1} parent=31 // pred_region
          %s358 = ssub.s32 256, 256
          %359 = vsyncadd %s350, %s358
          %s360 = smul.addr %s24, 4
          %s361 = sadd.s32 %s25, %s360
          %s362 = smul.addr %s361, 128
          %s363 = scalar_lea.hbm %s3, %s362
          %s364 = sshll.u32 %s353, 4
          %s365 = int_to_ptr.vmem [resolvable:$true] %s364
          %370 = dma.vmem_to_hbm [thread:$0]  %s365, 256, %s363, %s350, 128, 256, 8
        $region40: #{tpu_custom_call.1} parent=31 // pred_fallthru
          _
      $region32: #{tpu_custom_call.1} parent=5 // pred_fallthru
        _
      %p371 = scmp.le.s32.totalorder 2, %s15
      // Predicated region
      $region41: #{tpu_custom_call.1} parent=5 // pred_check
        %p372 = pneg %p371
      $region42: #{tpu_custom_call.1} parent=5 // pred_check_branch
        %374 = sbr.rel (%p372) target = $region44
      $region43: #{tpu_custom_call.1} parent=5 // pred_region
        %s375 = ssub.s32 %s15, 2
        // Predicated region
        $region45: #{tpu_custom_call.1} parent=43 // pred_check
          %p376 = pneg %p128
        $region46: #{tpu_custom_call.1} parent=43 // pred_check_branch
          %378 = sbr.rel (%p376) target = $region48
        $region47: #{tpu_custom_call.1} parent=43 // pred_region
          %s379 = sand.u32 %s113, 1
          %s380 = scalar_lea.sflag [#allocation4], %s379
          %s381 = sand.u32 %s113, 1
          %s382 = smul.addr %s381, 16
          %s383 = scalar_lea.vmem [#allocation5], %s382
          %384 = dma.done %s380, 256
        $region48: #{tpu_custom_call.1} parent=43 // pred_fallthru
          _
      $region44: #{tpu_custom_call.1} parent=5 // pred_fallthru
        _
    $region6: #{tpu_custom_call.1} parent=1 // loop_footer
      %s19 = sadd.s32 1, %s15
    $region7: #{tpu_custom_call.1} parent=1 // loop_footer_branch
      %14 = sbr.rel target = $region3
    $region8: #{tpu_custom_call.1} parent=1 // loop_exit
      _
    %385 = vsyncpa [#allocation3], 1
    %s386 = scalar_lea.sflag [#allocation3], 1
    %387 = vsyncpa %s386, 1
    %388 = vsyncpa [#allocation4], 1
    %s389 = scalar_lea.sflag [#allocation4], 1
    %390 = vsyncpa %s389, 1

</llo_original>
